<compile_context>
chip_gen: v6e
topology: v6e:2x2x1
jax: 0.10.0
libtpu: 0.0.40
codegen_flags: <defaults>
</compile_context>

<pallas_src>
import functools

import jax
import jax.numpy as jnp
from jax.experimental import pallas as pl
from jax.experimental.pallas import tpu as pltpu


# ----------------------------- helpers --------------------------------------

def _round_up(x, m):
    return ((x + m - 1) // m) * m


_COMPILER_PARAMS = pltpu.CompilerParams(
    dimension_semantics=("arbitrary",),          # single reduction grid axis
    vmem_limit_bytes=32 * 1024 * 1024,           # explicit; safe on v5e/v6e/v7x
)


def _smem_scalar_spec():
    return pl.BlockSpec((1, 1), lambda j: (0, 0),
                        memory_space=pltpu.MemorySpace.SMEM)


# ----------------------------- kernels --------------------------------------

def _ce_acc_kernel(logits_ref, labels_ref, loss_ref, acc_ref,
                   loss_acc, corr_acc, *, n_valid, row_tile):
    """Fused cross-entropy loss + argmax accuracy.

    logits_ref: (row_tile, n_cls) f32 block of the natural (M, N) layout.
    labels_ref: (row_tile, 1) i32.
    loss_acc / corr_acc: (row_tile, 1) f32 VMEM vector accumulators.
    Outputs: (1,1) SMEM scalars (written only at the last grid step).
    """
    j = pl.program_id(0)

    @pl.when(j == 0)
    def _():
        loss_acc[...] = jnp.zeros_like(loss_acc)
        corr_acc[...] = jnp.zeros_like(corr_acc)

    x = logits_ref[...].astype(jnp.float32)                    # (T, N)
    lbl = labels_ref[...]                                      # (T, 1) i32
    n_cls = x.shape[-1]

    # Validity mask built in-kernel (no mask input stream, no -1 sentinels).
    row = jax.lax.broadcasted_iota(jnp.int32, (row_tile, 1), 0) + j * row_tile
    valid = (row < n_valid).astype(jnp.float32)                # (T, 1)

    # log-sum-exp over the (tiny) class axis = lane axis.
    mx = jnp.max(x, axis=-1, keepdims=True)                    # (T, 1)
    lse = mx + jnp.log(jnp.sum(jnp.exp(x - mx), axis=-1, keepdims=True))

    cls = jax.lax.broadcasted_iota(jnp.int32, x.shape, 1)      # (T, N)
    onehot = (cls == lbl).astype(jnp.float32)                  # (T, N)
    picked = jnp.sum(x * onehot, axis=-1, keepdims=True)       # (T, 1)

    # In-kernel argmax over classes (first max index, like torch/jnp argmax).
    pred = jnp.min(jnp.where(x == mx, cls, n_cls), axis=-1, keepdims=True)

    loss_acc[...] += (lse - picked) * valid
    corr_acc[...] += (pred == lbl).astype(jnp.float32) * valid

    @pl.when(j == pl.num_programs(0) - 1)
    def _():
        inv = 1.0 / float(n_valid)
        loss_ref[0, 0] = jnp.sum(loss_acc[...]) * inv
        acc_ref[0, 0] = jnp.sum(corr_acc[...]) * inv


def _bce_kernel(x_ref, z_ref, loss_ref, acc_vmem, *, n_valid, row_tile):
    """Numerically stable BCEWithLogits mean over (rows, 128) slabs."""
    j = pl.program_id(0)

    @pl.when(j == 0)
    def _():
        acc_vmem[...] = jnp.zeros_like(acc_vmem)

    x = x_ref[...]
    z = z_ref[...]

    row = jax.lax.broadcasted_iota(jnp.int32, x.shape, 0) + j * row_tile
    lane = jax.lax.broadcasted_iota(jnp.int32, x.shape, 1)
    valid = ((row * 128 + lane) < n_valid).astype(jnp.float32)

    per = jnp.maximum(x, 0.0) - x * z + jnp.log(1.0 + jnp.exp(-jnp.abs(x)))
    acc_vmem[...] += per * valid

    @pl.when(j == pl.num_programs(0) - 1)
    def _():
        loss_ref[0, 0] = jnp.sum(acc_vmem[...]) * (1.0 / float(n_valid))


def _acc_kernel(pred_ref, label_ref, acc_ref, acc_vmem, *, n_valid, row_tile):
    """Masked mean(pred == label) over (rows, 128) slabs."""
    j = pl.program_id(0)

    @pl.when(j == 0)
    def _():
        acc_vmem[...] = jnp.zeros_like(acc_vmem)

    p = pred_ref[...]
    l = label_ref[...]

    row = jax.lax.broadcasted_iota(jnp.int32, p.shape, 0) + j * row_tile
    lane = jax.lax.broadcasted_iota(jnp.int32, p.shape, 1)
    valid = ((row * 128 + lane) < n_valid).astype(jnp.float32)

    acc_vmem[...] += (p == l).astype(jnp.float32) * valid

    @pl.when(j == pl.num_programs(0) - 1)
    def _():
        acc_ref[0, 0] = jnp.sum(acc_vmem[...]) * (1.0 / float(n_valid))


# ----------------------------- wrappers --------------------------------------

def ce_loss_and_accuracy(logits, label):
    """Fused CrossEntropyLoss + argmax accuracy in a single pallas_call."""
    n = logits.shape[-1]
    x = jnp.asarray(logits, jnp.float32).reshape(-1, n)        # (M, N)
    y = jnp.asarray(label, jnp.int32).reshape(-1, 1)           # (M, 1)
    m = x.shape[0]

    row_tile = min(4096, _round_up(m, 8))
    mp = _round_up(m, row_tile)
    x = jnp.pad(x, ((0, mp - m), (0, 0)))
    y = jnp.pad(y, ((0, mp - m), (0, 0)))

    kernel = functools.partial(_ce_acc_kernel, n_valid=m, row_tile=row_tile)
    loss, acc = pl.pallas_call(
        kernel,
        out_shape=(jax.ShapeDtypeStruct((1, 1), jnp.float32),
                   jax.ShapeDtypeStruct((1, 1), jnp.float32)),
        grid=(mp // row_tile,),
        in_specs=[pl.BlockSpec((row_tile, n), lambda j: (j, 0)),
                  pl.BlockSpec((row_tile, 1), lambda j: (j, 0))],
        out_specs=(_smem_scalar_spec(), _smem_scalar_spec()),
        scratch_shapes=[pltpu.VMEM((row_tile, 1), jnp.float32),
                        pltpu.VMEM((row_tile, 1), jnp.float32)],
        compiler_params=_COMPILER_PARAMS,
    )(x, y)
    return loss[0, 0], acc[0, 0]


def _slab_layout(m):
    """Pick padded row count + row tile for a (rows, 128) slab of m elements."""
    rows = max(-(-m // 128), 1)
    row_tile = min(2048, _round_up(rows, 8))
    rp = _round_up(rows, row_tile)
    return rp, row_tile


def _to_slab(v, rp):
    total = rp * 128
    return jnp.pad(v, (0, total - v.shape[0])).reshape(rp, 128)


def bce_with_logits_loss(logits, label):
    x = jnp.asarray(logits, jnp.float32).reshape(-1)
    z = jnp.asarray(label, jnp.float32).reshape(-1)
    m = x.shape[0]
    rp, row_tile = _slab_layout(m)

    kernel = functools.partial(_bce_kernel, n_valid=m, row_tile=row_tile)
    out = pl.pallas_call(
        kernel,
        out_shape=jax.ShapeDtypeStruct((1, 1), jnp.float32),
        grid=(rp // row_tile,),
        in_specs=[pl.BlockSpec((row_tile, 128), lambda j: (j, 0))] * 2,
        out_specs=_smem_scalar_spec(),
        scratch_shapes=[pltpu.VMEM((row_tile, 128), jnp.float32)],
        compiler_params=_COMPILER_PARAMS,
    )(_to_slab(x, rp), _to_slab(z, rp))
    return out[0, 0]


def accuracy_from_pred(pred, label):
    p = jnp.asarray(pred, jnp.int32).reshape(-1)
    l = jnp.asarray(label, jnp.int32).reshape(-1)
    m = p.shape[0]
    rp, row_tile = _slab_layout(m)

    kernel = functools.partial(_acc_kernel, n_valid=m, row_tile=row_tile)
    out = pl.pallas_call(
        kernel,
        out_shape=jax.ShapeDtypeStruct((1, 1), jnp.float32),
        grid=(rp // row_tile,),
        in_specs=[pl.BlockSpec((row_tile, 128), lambda j: (j, 0))] * 2,
        out_specs=_smem_scalar_spec(),
        scratch_shapes=[pltpu.VMEM((row_tile, 128), jnp.float32)],
        compiler_params=_COMPILER_PARAMS,
    )(_to_slab(p, rp), _to_slab(l, rp))
    return out[0, 0]


# ----------------------------- module port -----------------------------------

class FewShotREModelPallas:
    """JAX/Pallas port of FewShotREModel (loss + accuracy hot paths)."""

    def __init__(self, sentence_encoder=None):
        # TODO(synk): nn.DataParallel(sentence_encoder) wraps an injected module
        # whose forward is not defined in this base class; nothing to port here.
        self.sentence_encoder = sentence_encoder

    def forward(self, support, query, N, K, Q):
        # Matches the PyTorch base class exactly: abstract.
        raise NotImplementedError

    def loss(self, logits, label, Bi=False):
        if Bi:
            return bce_with_logits_loss(logits, label)
        # CrossEntropyLoss over logits.view(-1, N) / label.view(-1).
        ce, _ = ce_loss_and_accuracy(logits, label)
        return ce

    def loss_and_accuracy(self, logits, label):
        """Fused CE loss + argmax accuracy (one pallas_call, one logits pass).

        Prefer this on the training hot path over loss() + accuracy(): it
        avoids a separate host-side argmax, extra pad/reshape XLA ops and a
        second kernel launch.
        """
        return ce_loss_and_accuracy(logits, label)

    def accuracy(self, pred, label):
        return accuracy_from_pred(pred, label)


# ----------------------------- reference (pure JAX) ---------------------------

def _ref_ce(logits, label):
    n = logits.shape[-1]
    x = logits.reshape(-1, n).astype(jnp.float32)
    y = label.reshape(-1)
    lse = jax.scipy.special.logsumexp(x, axis=-1)
    picked = jnp.take_along_axis(x, y[:, None], axis=-1)[:, 0]
    return jnp.mean(lse - picked)


def _ref_bce(logits, label):
    x = logits.astype(jnp.float32)
    z = label.astype(jnp.float32)
    return jnp.mean(jnp.maximum(x, 0.0) - x * z
                    + jnp.log(1.0 + jnp.exp(-jnp.abs(x))))


def _ref_acc(pred, label):
    return jnp.mean((pred.reshape(-1) == label.reshape(-1)).astype(jnp.float32))


# ----------------------------- main -------------------------------------------

if __name__ == "__main__":
    key = jax.random.PRNGKey(0)
    k1, k2, k3, k4 = jax.random.split(key, 4)

    # Few-shot episode shapes: batch=2 episodes, N=5 classes, Q=2 queries/class.
    B, N, Q = 2, 5, 2
    logits = jax.random.normal(k1, (B, N * Q, N), dtype=jnp.float32)
    label = jax.random.randint(k2, (B, N * Q), 0, N, dtype=jnp.int32)

    bi_logits = jax.random.normal(k3, (B, N * Q, N), dtype=jnp.float32)
    bi_label = jax.random.bernoulli(k4, 0.5, (B, N * Q, N)).astype(jnp.float32)

    model = FewShotREModelPallas()

    # Fused CE loss + accuracy: one kernel launch, argmax computed in-kernel.
    ce, acc = model.loss_and_accuracy(logits, label)
    ce = jax.block_until_ready(ce)
    acc = jax.block_until_ready(acc)

    bce = jax.block_until_ready(model.loss(bi_logits, bi_label, Bi=True))

    # Standalone accuracy path (pred supplied externally, as in the torch API).
    pred = jnp.argmax(logits, axis=-1).astype(jnp.int32)
    acc_standalone = jax.block_until_ready(model.accuracy(pred, label))

    # Check against pure-JAX references.
    assert jnp.allclose(ce, _ref_ce(logits, label), atol=1e-5), (ce,)
    assert jnp.allclose(bce, _ref_bce(bi_logits, bi_label), atol=1e-5), (bce,)
    assert jnp.allclose(acc, _ref_acc(pred, label), atol=1e-6), (acc,)
    assert jnp.allclose(acc_standalone, _ref_acc(pred, label), atol=1e-6), (
        acc_standalone,)

    print("KERNEL_OK")
</pallas_src>

<mosaic_0001>
module attributes {stable_mosaic.version = 11 : i64} {
  func.func @_ce_acc_kernel(%arg0: i32, %arg1: memref<24x5xf32, #tpu.memory_space<vmem>>, %arg2: memref<24x1xi32, #tpu.memory_space<vmem>>, %arg3: memref<1x1xf32, #tpu.memory_space<smem>>, %arg4: memref<1x1xf32, #tpu.memory_space<smem>>, %arg5: memref<24x1xf32, #tpu.memory_space<vmem>>, %arg6: memref<24x1xf32, #tpu.memory_space<vmem>>) attributes {dimension_semantics = [#tpu.dimension_semantics<arbitrary>], iteration_bounds = array<i64: 1>, scalar_prefetch = 0 : i64, scratch_operands = 2 : i64, tpu.core_type = #tpu.core_type<tc>, window_params = [{transform_indices = @transform_0, window_bounds = array<i64: 24, 5>}, {transform_indices = @transform_1, window_bounds = array<i64: 24, 1>}, {transform_indices = @transform_2, window_bounds = array<i64: 1, 1>}, {transform_indices = @transform_3, window_bounds = array<i64: 1, 1>}]} {
    %c0_i32 = arith.constant 0 : i32
    %0 = arith.cmpi eq, %arg0, %c0_i32 : i32
    %1 = arith.extui %0 : i1 to i32
    %c0_i32_0 = arith.constant 0 : i32
    %2 = arith.cmpi ne, %1, %c0_i32_0 : i32
    scf.if %2 {
      %cst_17 = arith.constant 0.000000e+00 : f32
      %51 = vector.broadcast %cst_17 : f32 to vector<24x1xf32>
      %c0_18 = arith.constant 0 : index
      %c0_19 = arith.constant 0 : index
      %52 = vector.load %arg5[%c0_18, %c0_19] : memref<24x1xf32, #tpu.memory_space<vmem>>, vector<24x1xf32>
      tpu.vector_store %arg5[%c0_18, %c0_19], %51 {strides = array<i32>} : memref<24x1xf32, #tpu.memory_space<vmem>>, vector<24x1xf32>,
      %cst_20 = arith.constant 0.000000e+00 : f32
      %53 = vector.broadcast %cst_20 : f32 to vector<24x1xf32>
      %c0_21 = arith.constant 0 : index
      %c0_22 = arith.constant 0 : index
      %54 = vector.load %arg6[%c0_21, %c0_22] : memref<24x1xf32, #tpu.memory_space<vmem>>, vector<24x1xf32>
      tpu.vector_store %arg6[%c0_21, %c0_22], %53 {strides = array<i32>} : memref<24x1xf32, #tpu.memory_space<vmem>>, vector<24x1xf32>,
    } else {
    }
    %c0 = arith.constant 0 : index
    %c0_1 = arith.constant 0 : index
    %3 = vector.load %arg1[%c0, %c0_1] : memref<24x5xf32, #tpu.memory_space<vmem>>, vector<24x5xf32>
    %c0_2 = arith.constant 0 : index
    %c0_3 = arith.constant 0 : index
    %4 = vector.load %arg2[%c0_2, %c0_3] : memref<24x1xi32, #tpu.memory_space<vmem>>, vector<24x1xi32>
    %5 = tpu.iota {dimensions = array<i32: 0>} : vector<24x1xi32>
    %c24_i32 = arith.constant 24 : i32
    %6 = arith.muli %arg0, %c24_i32 : i32
    %7 = vector.broadcast %6 : i32 to vector<24x1xi32>
    %8 = arith.addi %5, %7 : vector<24x1xi32>
    %c20_i32 = arith.constant 20 : i32
    %9 = vector.broadcast %c20_i32 : i32 to vector<24x1xi32>
    %10 = arith.cmpi slt, %8, %9 : vector<24x1xi32>
    %11 = arith.extui %10 : vector<24x1xi1> to vector<24x1xi32>
    %12 = arith.sitofp %11 : vector<24x1xi32> to vector<24x1xf32>
    %cst = arith.constant dense<0xFF800000> : vector<24xf32>
    %13 = vector.multi_reduction <maximumf>, %3, %cst [1] : vector<24x5xf32> to vector<24xf32>
    %14 = vector.shape_cast %13 : vector<24xf32> to vector<24x1xf32>
    %15 = vector.broadcast %14 : vector<24x1xf32> to vector<24x5xf32>
    %16 = arith.subf %3, %15 : vector<24x5xf32>
    %17 = math.exp %16 : vector<24x5xf32>
    %cst_4 = arith.constant dense<0.000000e+00> : vector<24xf32>
    %18 = vector.multi_reduction <add>, %17, %cst_4 [1] : vector<24x5xf32> to vector<24xf32>
    %19 = vector.shape_cast %18 : vector<24xf32> to vector<24x1xf32>
    %20 = math.log %19 : vector<24x1xf32>
    %21 = arith.addf %14, %20 : vector<24x1xf32>
    %22 = tpu.iota {dimensions = array<i32: 1>} : vector<24x5xi32>
    %23 = vector.broadcast %4 : vector<24x1xi32> to vector<24x5xi32>
    %24 = arith.cmpi eq, %22, %23 : vector<24x5xi32>
    %25 = arith.extui %24 : vector<24x5xi1> to vector<24x5xi32>
    %26 = arith.sitofp %25 : vector<24x5xi32> to vector<24x5xf32>
    %27 = arith.mulf %3, %26 : vector<24x5xf32>
    %cst_5 = arith.constant dense<0.000000e+00> : vector<24xf32>
    %28 = vector.multi_reduction <add>, %27, %cst_5 [1] : vector<24x5xf32> to vector<24xf32>
    %29 = vector.shape_cast %28 : vector<24xf32> to vector<24x1xf32>
    %30 = vector.broadcast %14 : vector<24x1xf32> to vector<24x5xf32>
    %31 = arith.cmpf oeq, %3, %30 : vector<24x5xf32>
    %c5_i32 = arith.constant 5 : i32
    %32 = vector.broadcast %c5_i32 : i32 to vector<24x5xi32>
    %33 = arith.select %31, %22, %32 : vector<24x5xi1>, vector<24x5xi32>
    %cst_6 = arith.constant dense<2147483647> : vector<24xi32>
    %34 = vector.multi_reduction <minsi>, %33, %cst_6 [1] : vector<24x5xi32> to vector<24xi32>
    %35 = vector.shape_cast %34 : vector<24xi32> to vector<24x1xi32>
    %c0_7 = arith.constant 0 : index
    %c0_8 = arith.constant 0 : index
    %36 = vector.load %arg5[%c0_7, %c0_8] : memref<24x1xf32, #tpu.memory_space<vmem>>, vector<24x1xf32>
    %37 = arith.subf %21, %29 : vector<24x1xf32>
    %38 = arith.mulf %37, %12 : vector<24x1xf32>
    %39 = arith.addf %36, %38 : vector<24x1xf32>
    %c0_9 = arith.constant 0 : index
    %c0_10 = arith.constant 0 : index
    %40 = vector.load %arg5[%c0_9, %c0_10] : memref<24x1xf32, #tpu.memory_space<vmem>>, vector<24x1xf32>
    tpu.vector_store %arg5[%c0_9, %c0_10], %39 {strides = array<i32>} : memref<24x1xf32, #tpu.memory_space<vmem>>, vector<24x1xf32>,
    %c0_11 = arith.constant 0 : index
    %c0_12 = arith.constant 0 : index
    %41 = vector.load %arg6[%c0_11, %c0_12] : memref<24x1xf32, #tpu.memory_space<vmem>>, vector<24x1xf32>
    %42 = arith.cmpi eq, %35, %4 : vector<24x1xi32>
    %43 = arith.extui %42 : vector<24x1xi1> to vector<24x1xi32>
    %44 = arith.sitofp %43 : vector<24x1xi32> to vector<24x1xf32>
    %45 = arith.mulf %44, %12 : vector<24x1xf32>
    %46 = arith.addf %41, %45 : vector<24x1xf32>
    %c0_13 = arith.constant 0 : index
    %c0_14 = arith.constant 0 : index
    %47 = vector.load %arg6[%c0_13, %c0_14] : memref<24x1xf32, #tpu.memory_space<vmem>>, vector<24x1xf32>
    tpu.vector_store %arg6[%c0_13, %c0_14], %46 {strides = array<i32>} : memref<24x1xf32, #tpu.memory_space<vmem>>, vector<24x1xf32>,
    %c0_i32_15 = arith.constant 0 : i32
    %48 = arith.cmpi eq, %arg0, %c0_i32_15 : i32
    %49 = arith.extui %48 : i1 to i32
    %c0_i32_16 = arith.constant 0 : i32
    %50 = arith.cmpi ne, %49, %c0_i32_16 : i32
    scf.if %50 {
      %c0_17 = arith.constant 0 : index
      %c0_18 = arith.constant 0 : index
      %51 = vector.load %arg5[%c0_17, %c0_18] : memref<24x1xf32, #tpu.memory_space<vmem>>, vector<24x1xf32>
      %52 = vector.shape_cast %51 : vector<24x1xf32> to vector<1x24x1xf32>
      %cst_19 = arith.constant dense<0.000000e+00> : vector<1xf32>
      %53 = vector.multi_reduction <add>, %52, %cst_19 [1, 2] : vector<1x24x1xf32> to vector<1xf32>
      %54 = vector.shape_cast %53 : vector<1xf32> to vector<1x1x1xf32>
      %55 = vector.extract %54[0, 0, 0] : f32 from vector<1x1x1xf32>
      %cst_20 = arith.constant 5.000000e-02 : f32
      %56 = arith.mulf %55, %cst_20 : f32
      %c0_21 = arith.constant 0 : index
      %c0_22 = arith.constant 0 : index
      %57 = memref.load %arg3[%c0_21, %c0_22] : memref<1x1xf32, #tpu.memory_space<smem>>
      memref.store %56, %arg3[%c0_21, %c0_22] : memref<1x1xf32, #tpu.memory_space<smem>>
      %c0_23 = arith.constant 0 : index
      %c0_24 = arith.constant 0 : index
      %58 = vector.load %arg6[%c0_23, %c0_24] : memref<24x1xf32, #tpu.memory_space<vmem>>, vector<24x1xf32>
      %59 = vector.shape_cast %58 : vector<24x1xf32> to vector<1x24x1xf32>
      %cst_25 = arith.constant dense<0.000000e+00> : vector<1xf32>
      %60 = vector.multi_reduction <add>, %59, %cst_25 [1, 2] : vector<1x24x1xf32> to vector<1xf32>
      %61 = vector.shape_cast %60 : vector<1xf32> to vector<1x1x1xf32>
      %62 = vector.extract %61[0, 0, 0] : f32 from vector<1x1x1xf32>
      %cst_26 = arith.constant 5.000000e-02 : f32
      %63 = arith.mulf %62, %cst_26 : f32
      %c0_27 = arith.constant 0 : index
      %c0_28 = arith.constant 0 : index
      %64 = memref.load %arg4[%c0_27, %c0_28] : memref<1x1xf32, #tpu.memory_space<smem>>
      memref.store %63, %arg4[%c0_27, %c0_28] : memref<1x1xf32, #tpu.memory_space<smem>>
    } else {
    }
    return
  }
  func.func @transform_0(%arg0: i32) -> (i32, i32) {
    %c0_i32 = arith.constant 0 : i32
    %c0_i32_0 = arith.constant 0 : i32
    return %arg0, %c0_i32 : i32, i32
  }
  func.func @transform_1(%arg0: i32) -> (i32, i32) {
    %c0_i32 = arith.constant 0 : i32
    %c0_i32_0 = arith.constant 0 : i32
    return %arg0, %c0_i32 : i32, i32
  }
  func.func @transform_2(%arg0: i32) -> (i32, i32) {
    %c0_i32 = arith.constant 0 : i32
    %c0_i32_0 = arith.constant 0 : i32
    %c0_i32_1 = arith.constant 0 : i32
    return %c0_i32, %c0_i32_0 : i32, i32
  }
  func.func @transform_3(%arg0: i32) -> (i32, i32) {
    %c0_i32 = arith.constant 0 : i32
    %c0_i32_0 = arith.constant 0 : i32
    %c0_i32_1 = arith.constant 0 : i32
    return %c0_i32, %c0_i32_0 : i32, i32
  }
}

</mosaic_0001>

<llo_original>
// kernel: tpu_custom_call.1
$region0: #{tpu_custom_call.1}
  #allocation0 [shape = 'u32[]', space=smem, size = 0x4, offset = 0x4, fixed_abs, tag = 'smem constant byte address 0x4 - core index']
  #allocation1 [shape = 'u32[144,128]{1,0:T(1,128)}', space=vmem, size = 0x12000, scoped, tag = 'internal scratch']
  #allocation2 [shape = 'f32[24,1]{1,0:T(8,128)}', space=vmem, size = 0x3000, scoped, tag = 'scratch operand']
  #allocation3 [shape = 'f32[24,1]{1,0:T(8,128)}', space=vmem, size = 0x3000, scoped, tag = 'scratch operand']
  %s0 = inlined_call_operand.vmem [shape: f32[24,5], index: 0, kind: input, shape index: {}]
  %s1 = inlined_call_operand.vmem [shape: s32[24,1], index: 1, kind: input, shape index: {}]
  %s2 = inlined_call_operand.hbm [shape: f32[1,1], index: 2, kind: output, shape index: {0}]
  %s3 = inlined_call_operand.hbm [shape: f32[1,1], index: 3, kind: output, shape index: {1}]
  %4 = xla_tuple %s2, %s3
  %s5 = sld [smem:[#allocation0]]
  $region34: #{tpu_custom_call.1} parent=0
    _
  %s7 = ssub.s32 1, %s5
  %s8 = scalar_select 0, %s7, %s5
  $region1: #{tpu_custom_call.1} parent=0
    #allocation4 [shape = 'u8[512]{0}', space=smem, size = 0x200, scoped, tag = 'output window, operand 0, single buffered']
    #allocation5 [shape = 's32[1]{0}', space=sflag, size = 0x4, scoped, tag = 'scoped memory for tpu_custom_call.1']
    #allocation6 [shape = 'u8[512]{0}', space=smem, size = 0x200, scoped, tag = 'output window, operand 1, single buffered']
    #allocation7 [shape = 's32[1]{0}', space=sflag, size = 0x4, scoped, tag = 'scoped memory for tpu_custom_call.1']
    %9 = vsyncpa [#allocation5], 0
    %10 = vsyncpa [#allocation7], 0
    // Predicated region
    $region2: #{tpu_custom_call.1} parent=1 // pred_check
      _
    $region3: #{tpu_custom_call.1} parent=1 // pred_check_branch
      %12 = sbr.rel (0) target = $region5
    $region4: #{tpu_custom_call.1} parent=1 // pred_region
      _
    $region5: #{tpu_custom_call.1} parent=1 // pred_fallthru
      _
    // Predicated region
    $region6: #{tpu_custom_call.1} parent=1 // pred_check
      _
    $region7: #{tpu_custom_call.1} parent=1 // pred_check_branch
      %14 = sbr.rel (0) target = $region9
    $region8: #{tpu_custom_call.1} parent=1 // pred_region
      _
    $region9: #{tpu_custom_call.1} parent=1 // pred_fallthru
      _
    %p15 = scmp.eq.s32.totalorder 0, 0
    // Predicated region
    $region10: #{tpu_custom_call.1} parent=1 // pred_check
      %p16 = pneg %p15
    $region11: #{tpu_custom_call.1} parent=1 // pred_check_branch
      %18 = sbr.rel (%p16) target = $region13
    $region12: #{tpu_custom_call.1} parent=1 // pred_region
      %vm19 = vcmask 7168
      %20 = vst.msk [vmem:[#allocation2] sm:$0xff] %vm19, 0.0
      %21 = vst.msk [vmem:[#allocation2 + $0x8] sm:$0xff] %vm19, 0.0
      %22 = vst.msk [vmem:[#allocation2 + $0x10] sm:$0xff] %vm19, 0.0
      %23 = vst.msk [vmem:[#allocation3] sm:$0xff] %vm19, 0.0
      %24 = vst.msk [vmem:[#allocation3 + $0x8] sm:$0xff] %vm19, 0.0
      %25 = vst.msk [vmem:[#allocation3 + $0x10] sm:$0xff] %vm19, 0.0
    $region13: #{tpu_custom_call.1} parent=1 // pred_fallthru
      _
    %v26 = vld [vmem:[%s0] sm:$0xff]
    %v27 = vld [vmem:[%s0 + $0x8] sm:$0xff]
    %v28 = vld [vmem:[%s0 + $0x10] sm:$0xff]
    %v29 = vld [vmem:[%s1] sm:$0xff]
    %v30 = vld [vmem:[%s1 + $0x8] sm:$0xff]
    %v31 = vld [vmem:[%s1 + $0x10] sm:$0xff]
    %v32 = vlaneseq
    %v33 = vshrl.u32 %v32, 7
    %v34 = vadd.s32 %v33, 8
    %v35 = vadd.s32 %v33, 16
    %s36 = smul.u32 0, 24
    %v37 = vstv %s36
    %v38 = vadd.s32 %v33, %v37
    %v39 = vadd.s32 %v34, %v37
    %v40 = vadd.s32 %v35, %v37
    %vm41 = vcmp.lt.s32.totalorder %v38, 20
    %vm42 = vcmp.lt.s32.totalorder %v39, 20
    %vm43 = vcmp.lt.s32.totalorder %v40, 20
    %v44 = vsel %vm41, 1, 0
    %v45 = vsel %vm42, 1, 0
    %v46 = vsel %vm43, 1, 0
    %v47 = vcvt.s32.f32 %v44
    %v48 = vcvt.s32.f32 %v45
    %v49 = vcvt.s32.f32 %v46
    %vm50 = vcmask 39936
    %v51 = vsel %vm50, %v26, -inf
    %52 = vmax.xlane.f32.xlu0 %v51
    %v53 = vpop.xlane.xlu0 %52
    %v54 = vsel %vm50, %v27, -inf
    %55 = vmax.xlane.f32.xlu0 %v54
    %v56 = vpop.xlane.xlu0 %55
    %v57 = vsel %vm50, %v28, -inf
    %58 = vmax.xlane.f32.xlu0 %v57
    %v59 = vpop.xlane.xlu0 %58
    %v60 = vsub.f32 %v26, %v53
    %v61 = vsub.f32 %v27, %v56
    %v62 = vsub.f32 %v28, %v59
    %v63 = vmul.f32 %v60, 1.442695
    %v64 = vpow.pop %v63
    %v65 = vmul.f32 %v61, 1.442695
    %v66 = vpow.pop %v65
    %v67 = vmul.f32 %v62, 1.442695
    %v68 = vpow.pop %v67
    %v69 = vsel %vm50, %v64, 0.0
    %70 = vadd.xlane.f32.xlu0 %v69
    %v71 = vpop.xlane.xlu0 %70
    %v72 = vsel %vm50, %v66, 0.0
    %73 = vadd.xlane.f32.xlu0 %v72
    %v74 = vpop.xlane.xlu0 %73
    %v75 = vsel %vm50, %v68, 0.0
    %76 = vadd.xlane.f32.xlu0 %v75
    %v77 = vpop.xlane.xlu0 %76
    %v78 = vlog2.pop %v71
    %v79 = vmul.f32 %v78, 0.6931472
    %v80 = vlog2.pop %v74
    %v81 = vmul.f32 %v80, 0.6931472
    %v82 = vlog2.pop %v77
    %v83 = vmul.f32 %v82, 0.6931472
    %v84 = vadd.f32 %v53, %v79
    %v85 = vadd.f32 %v56, %v81
    %v86 = vadd.f32 %v59, %v83
    %v87 = vlaneseq
    %v88 = vand.u32 %v87, 127
    %89 = vset.pattern.permute.xlu0 0
    %90 = vperm.xlu0 %89, %v29
    %v91 = vpop.permute.xlu0 %90
    %92 = vset.pattern.permute.xlu0 0
    %93 = vperm.xlu0 %92, %v30
    %v94 = vpop.permute.xlu0 %93
    %95 = vset.pattern.permute.xlu0 0
    %96 = vperm.xlu0 %95, %v31
    %v97 = vpop.permute.xlu0 %96
    %vm98 = vcmp.eq.s32.totalorder %v88, %v91
    %vm99 = vcmp.eq.s32.totalorder %v88, %v94
    %vm100 = vcmp.eq.s32.totalorder %v88, %v97
    %v101 = vsel %vm98, 1, 0
    %v102 = vsel %vm99, 1, 0
    %v103 = vsel %vm100, 1, 0
    %v104 = vcvt.s32.f32 %v101
    %v105 = vcvt.s32.f32 %v102
    %v106 = vcvt.s32.f32 %v103
    %v107 = vmul.f32 %v26, %v104
    %v108 = vmul.f32 %v27, %v105
    %v109 = vmul.f32 %v28, %v106
    %v110 = vsel %vm50, %v107, 0.0
    %111 = vadd.xlane.f32.xlu0 %v110
    %v112 = vpop.xlane.xlu0 %111
    %v113 = vsel %vm50, %v108, 0.0
    %114 = vadd.xlane.f32.xlu0 %v113
    %v115 = vpop.xlane.xlu0 %114
    %v116 = vsel %vm50, %v109, 0.0
    %117 = vadd.xlane.f32.xlu0 %v116
    %v118 = vpop.xlane.xlu0 %117
    %vm119 = vcmp.eq.f32.partialorder %v26, %v53
    %vm120 = vcmp.eq.f32.partialorder %v27, %v56
    %vm121 = vcmp.eq.f32.partialorder %v28, %v59
    %v122 = vsel %vm119, %v88, 5
    %v123 = vsel %vm120, %v88, 5
    %v124 = vsel %vm121, %v88, 5
    %v125 = vsel %vm50, %v122, 2147483647
    %v126 = vand.u32 %v125, 65535
    %v127 = vshra.s32 %v125, 16
    %v128 = vcvt.s32.f32 %v126
    %v129 = vcvt.s32.f32 %v127
    %130 = vmin.xlane.f32.xlu0 %v129
    %v131 = vpop.xlane.xlu0 %130
    %vm132 = vcmp.eq.f32.partialorder %v129, %v131
    %v133 = vsel %vm132, %v128, inf
    %134 = vmin.xlane.f32.xlu0 %v133
    %v135 = vpop.xlane.xlu0 %134
    %v136 = vcvt.f32.s32 %v135
    %v137 = vcvt.f32.s32 %v131
    %v138 = vshll.u32 %v137, 16
    %v139 = vadd.s32 %v138, %v136
    %v140 = vsel %vm50, %v123, 2147483647
    %v141 = vand.u32 %v140, 65535
    %v142 = vshra.s32 %v140, 16
    %v143 = vcvt.s32.f32 %v141
    %v144 = vcvt.s32.f32 %v142
    %145 = vmin.xlane.f32.xlu0 %v144
    %v146 = vpop.xlane.xlu0 %145
    %vm147 = vcmp.eq.f32.partialorder %v144, %v146
    %v148 = vsel %vm147, %v143, inf
    %149 = vmin.xlane.f32.xlu0 %v148
    %v150 = vpop.xlane.xlu0 %149
    %v151 = vcvt.f32.s32 %v150
    %v152 = vcvt.f32.s32 %v146
    %v153 = vshll.u32 %v152, 16
    %v154 = vadd.s32 %v153, %v151
    %v155 = vsel %vm50, %v124, 2147483647
    %v156 = vand.u32 %v155, 65535
    %v157 = vshra.s32 %v155, 16
    %v158 = vcvt.s32.f32 %v156
    %v159 = vcvt.s32.f32 %v157
    %160 = vmin.xlane.f32.xlu0 %v159
    %v161 = vpop.xlane.xlu0 %160
    %vm162 = vcmp.eq.f32.partialorder %v159, %v161
    %v163 = vsel %vm162, %v158, inf
    %164 = vmin.xlane.f32.xlu0 %v163
    %v165 = vpop.xlane.xlu0 %164
    %v166 = vcvt.f32.s32 %v165
    %v167 = vcvt.f32.s32 %v161
    %v168 = vshll.u32 %v167, 16
    %v169 = vadd.s32 %v168, %v166
    %v170 = vld [vmem:[#allocation2] sm:$0xff]
    %v171 = vld [vmem:[#allocation2 + $0x8] sm:$0xff]
    %v172 = vld [vmem:[#allocation2 + $0x10] sm:$0xff]
    %v173 = vsub.f32 %v84, %v112
    %v174 = vsub.f32 %v85, %v115
    %v175 = vsub.f32 %v86, %v118
    %v176 = vmul.f32 %v173, %v47
    %v177 = vmul.f32 %v174, %v48
    %v178 = vmul.f32 %v175, %v49
    %v179 = vadd.f32 %v170, %v176
    %v180 = vadd.f32 %v171, %v177
    %v181 = vadd.f32 %v172, %v178
    %vm182 = vcmask 7168
    %183 = vst.msk [vmem:[#allocation2] sm:$0xff] %vm182, %v179
    %184 = vst.msk [vmem:[#allocation2 + $0x8] sm:$0xff] %vm182, %v180
    %185 = vst.msk [vmem:[#allocation2 + $0x10] sm:$0xff] %vm182, %v181
    %v186 = vld [vmem:[#allocation3] sm:$0xff]
    %v187 = vld [vmem:[#allocation3 + $0x8] sm:$0xff]
    %v188 = vld [vmem:[#allocation3 + $0x10] sm:$0xff]
    %vm189 = vcmp.eq.s32.totalorder %v139, %v29
    %vm190 = vcmp.eq.s32.totalorder %v154, %v30
    %vm191 = vcmp.eq.s32.totalorder %v169, %v31
    %v192 = vsel %vm189, 1, 0
    %v193 = vsel %vm190, 1, 0
    %v194 = vsel %vm191, 1, 0
    %v195 = vcvt.s32.f32 %v192
    %v196 = vcvt.s32.f32 %v193
    %v197 = vcvt.s32.f32 %v194
    %v198 = vmul.f32 %v195, %v47
    %v199 = vmul.f32 %v196, %v48
    %v200 = vmul.f32 %v197, %v49
    %v201 = vadd.f32 %v186, %v198
    %v202 = vadd.f32 %v187, %v199
    %v203 = vadd.f32 %v188, %v200
    %204 = vst.msk [vmem:[#allocation3] sm:$0xff] %vm182, %v201
    %205 = vst.msk [vmem:[#allocation3 + $0x8] sm:$0xff] %vm182, %v202
    %206 = vst.msk [vmem:[#allocation3 + $0x10] sm:$0xff] %vm182, %v203
    // Predicated region
    $region14: #{tpu_custom_call.1} parent=1 // pred_check
      %p207 = pneg %p15
    $region15: #{tpu_custom_call.1} parent=1 // pred_check_branch
      %209 = sbr.rel (%p207) target = $region17
    $region16: #{tpu_custom_call.1} parent=1 // pred_region
      %v210 = vld [vmem:[#allocation2] sm:$0xff]
      %v211 = vld [vmem:[#allocation2 + $0x8] sm:$0xff]
      %v212 = vld [vmem:[#allocation2 + $0x10] sm:$0xff]
      %v213 = vsel %vm182, %v210, 0.0
      %v214 = vsel %vm182, %v211, 0.0
      %v215 = vadd.f32 %v213, %v214
      %v216 = vsel %vm182, %v212, 0.0
      %v217 = vadd.f32 %v215, %v216
      %218 = vadd.xlane.f32.xlu0 %v217
      %v219 = vpop.xlane.xlu0 %218
      %v220 = vrot.slane %v219, 4
      %v221 = vadd.f32 %v219, %v220
      %v222 = vrot.slane %v221, 2
      %v223 = vadd.f32 %v221, %v222
      %v224 = vrot.slane %v223, 1
      %v225 = vadd.f32 %v223, %v224
      %s226 = vtos %v225
      %s227 = smul.f32 %s226, 0.05
      %s228 = scalar_lea.smem [#allocation4], 0
      %229 = sst [smem:[%s228]] %s227
      %v230 = vld [vmem:[#allocation3] sm:$0xff]
      %v231 = vld [vmem:[#allocation3 + $0x8] sm:$0xff]
      %v232 = vld [vmem:[#allocation3 + $0x10] sm:$0xff]
      %v233 = vsel %vm182, %v230, 0.0
      %v234 = vsel %vm182, %v231, 0.0
      %v235 = vadd.f32 %v233, %v234
      %v236 = vsel %vm182, %v232, 0.0
      %v237 = vadd.f32 %v235, %v236
      %238 = vadd.xlane.f32.xlu0 %v237
      %v239 = vpop.xlane.xlu0 %238
      %v240 = vrot.slane %v239, 4
      %v241 = vadd.f32 %v239, %v240
      %v242 = vrot.slane %v241, 2
      %v243 = vadd.f32 %v241, %v242
      %v244 = vrot.slane %v243, 1
      %v245 = vadd.f32 %v243, %v244
      %s246 = vtos %v245
      %s247 = smul.f32 %s246, 0.05
      %s248 = scalar_lea.smem [#allocation6], 0
      %249 = sst [smem:[%s248]] %s247
    $region17: #{tpu_custom_call.1} parent=1 // pred_fallthru
      _
    // Predicated region
    $region18: #{tpu_custom_call.1} parent=1 // pred_check
      _
    $region19: #{tpu_custom_call.1} parent=1 // pred_check_branch
      %251 = sbr.rel (0) target = $region21
    $region20: #{tpu_custom_call.1} parent=1 // pred_region
      %s253 = ssub.s32 16, 16
      %254 = vsyncadd [#allocation5], %s253
      %257 = dma.smem_to_hbm [#allocation4], 16, %s2, [#allocation5]
    $region21: #{tpu_custom_call.1} parent=1 // pred_fallthru
      _
    // Predicated region
    $region22: #{tpu_custom_call.1} parent=1 // pred_check
      _
    $region23: #{tpu_custom_call.1} parent=1 // pred_check_branch
      %259 = sbr.rel (0) target = $region25
    $region24: #{tpu_custom_call.1} parent=1 // pred_region
      %s261 = ssub.s32 16, 16
      %262 = vsyncadd [#allocation7], %s261
      %265 = dma.smem_to_hbm [#allocation6], 16, %s3, [#allocation7]
    $region25: #{tpu_custom_call.1} parent=1 // pred_fallthru
      _
    // Predicated region
    $region26: #{tpu_custom_call.1} parent=1 // pred_check
      _
    $region27: #{tpu_custom_call.1} parent=1 // pred_check_branch
      %267 = sbr.rel (0) target = $region29
    $region28: #{tpu_custom_call.1} parent=1 // pred_region
      %268 = dma.done [#allocation5], 16
    $region29: #{tpu_custom_call.1} parent=1 // pred_fallthru
      _
    // Predicated region
    $region30: #{tpu_custom_call.1} parent=1 // pred_check
      _
    $region31: #{tpu_custom_call.1} parent=1 // pred_check_branch
      %270 = sbr.rel (0) target = $region33
    $region32: #{tpu_custom_call.1} parent=1 // pred_region
      %271 = dma.done [#allocation7], 16
    $region33: #{tpu_custom_call.1} parent=1 // pred_fallthru
      _
    %272 = sfence
    %273 = vsyncpa [#allocation5], 1
    %274 = vsyncpa [#allocation7], 1

</llo_original>
